<compile_context>
chip_gen: v7x
topology: tpu7x:2x2x1
jax: 0.10.0
libtpu: 0.0.40
codegen_flags: <defaults>
</compile_context>

<pallas_src>
import jax
import jax.numpy as jnp
from jax.experimental import pallas as pl
from jax.experimental.pallas import tpu as pltpu

LANE = 128      # lane width (last-dim tiling unit)
SUBLANE = 8     # sublane width (second-to-last-dim tiling unit)


def _round_up(x, m):
    return ((x + m - 1) // m) * m


def mlp_kernel(x_ref, w1_ref, b1_ref, w2_ref, b2_ref, o_ref):
    # Layer 1: (TB, K) @ (K, H_pad) on the MXU with f32 accumulation; the
    # hidden activation never leaves VMEM.
    h = jnp.dot(x_ref[...], w1_ref[...], preferred_element_type=jnp.float32)
    h = jnp.maximum(h + b1_ref[...], 0.0)            # fused VPU add + max
    # Layer 2: (TB, H_pad) @ (H_pad, H) -> (TB, H); 32-lane masked store.
    o = jnp.dot(h, w2_ref[...], preferred_element_type=jnp.float32)
    o_ref[...] = jnp.maximum(o + b2_ref[...], 0.0)


def _choose_batch_tiling(B, block_batch):
    """Pick (TB, B_pad, n_tiles).

    TB is a multiple of 8 and capped (v5e 16 MiB scoped-VMEM guard); tiles are
    balanced so batch padding is bounded by ~7 rows per tile (not TB - 1); the
    grid has >= 2 steps whenever B > 8 so the batch axis can shard across both
    TensorCores on v7x.
    """
    tb_cap = _round_up(min(block_batch, 4096), SUBLANE)
    tb_target = max(SUBLANE, min(_round_up(B, SUBLANE), tb_cap))
    n_tiles = max(1, pl.cdiv(B, tb_target))
    if n_tiles == 1 and B > SUBLANE:
        n_tiles = 2
    tb = _round_up(pl.cdiv(B, n_tiles), SUBLANE)
    return tb, n_tiles * tb, n_tiles


def mlp_forward(x, w1, b1, w2, b2, *, block_batch=2048):
    """x: (B, input_dim); w1: (input_dim, size); b1: (size,) or (1, size);
    w2: (size, size); b2: (size,) or (1, size) -> (B, size)."""
    B, K = x.shape
    H = w1.shape[1]
    assert w1.shape == (K, H)
    assert w2.shape == (H, H)
    b1 = jnp.reshape(b1, (1, H)).astype(jnp.float32)
    b2 = jnp.reshape(b2, (1, H)).astype(jnp.float32)

    # Hidden width padded to a lane multiple (VMEM-only; padded w1 cols / b1
    # entries / w2 rows are zero -> exact). x (K lanes) and the output
    # (H lanes) stay at their real widths via full-dim blocks.
    H_pad = _round_up(max(H, LANE), LANE)

    TB, B_pad, n_tiles = _choose_batch_tiling(B, block_batch)

    xf = x if x.dtype == jnp.float32 else x.astype(jnp.float32)
    if B_pad != B:
        xf = jnp.pad(xf, ((0, B_pad - B), (0, 0)))  # batch rows only

    w1p = jnp.pad(w1.astype(jnp.float32), ((0, 0), (0, H_pad - H)))
    b1p = jnp.pad(b1, ((0, 0), (0, H_pad - H)))
    w2p = jnp.pad(w2.astype(jnp.float32), ((0, H_pad - H), (0, 0)))
    # b2 stays (1, H).

    cost = pl.CostEstimate(
        flops=2 * B_pad * (K * H_pad + H_pad * H),
        transcendentals=0,
        bytes_accessed=4 * (B_pad * K + K * H_pad + H_pad
                            + H_pad * H + H + B_pad * H),
    )

    out = pl.pallas_call(
        mlp_kernel,
        out_shape=jax.ShapeDtypeStruct((B_pad, H), jnp.float32),
        grid=(n_tiles,),
        in_specs=[
            # x: batch-tiled (double-buffered DMA overlaps compute);
            # feature dim left at its real width (full-dim block).
            pl.BlockSpec((TB, K), lambda i: (i, 0)),
            # Weights / biases: constant block index -> VMEM-resident.
            pl.BlockSpec((K, H_pad), lambda i: (0, 0)),
            pl.BlockSpec((1, H_pad), lambda i: (0, 0)),
            pl.BlockSpec((H_pad, H), lambda i: (0, 0)),
            pl.BlockSpec((1, H), lambda i: (0, 0)),
        ],
        out_specs=pl.BlockSpec((TB, H), lambda i: (i, 0)),
        compiler_params=pltpu.CompilerParams(
            dimension_semantics=("parallel",),
        ),
        cost_estimate=cost,
    )(xf, w1p, b1p, w2p, b2)

    # Only padded batch rows (if any) need slicing off.
    return out if B_pad == B else out[:B]


def init_params(key, input_dim, size=32):
    """Deterministic synthetic init (shapes match nn.Linear of the module)."""
    k1, k2, k3, k4 = jax.random.split(key, 4)
    # torch Linear weight is (out, in); we store (in, out) for y = x @ W + b.
    w1 = jax.random.uniform(k1, (input_dim, size), jnp.float32, -0.5, 0.5)
    b1 = jax.random.uniform(k2, (1, size), jnp.float32, -0.5, 0.5)
    w2 = jax.random.uniform(k3, (size, size), jnp.float32, -0.5, 0.5)
    b2 = jax.random.uniform(k4, (1, size), jnp.float32, -0.5, 0.5)
    return w1, b1, w2, b2


if __name__ == "__main__":
    # Pendulum observations are 3-dim; small batch for the correctness check.
    batch, input_dim, size = 8, 3, 32

    key = jax.random.PRNGKey(0)
    kx, kp = jax.random.split(key)
    x = jax.random.normal(kx, (batch, input_dim), jnp.float32)
    w1, b1, w2, b2 = init_params(kp, input_dim, size)

    out = mlp_forward(x, w1, b1, w2, b2)
    jax.block_until_ready(out)

    # Reference check in plain JAX (same math as the torch module).
    ref = jnp.maximum(jnp.maximum(x @ w1 + b1, 0.0) @ w2 + b2, 0.0)
    assert out.shape == (batch, size)
    assert jnp.allclose(out, ref, atol=1e-5, rtol=1e-5)

    # Also exercise the multi-tile (balanced-tile, >=2 grid steps) path.
    big_b = 1200
    xb = jax.random.normal(jax.random.PRNGKey(1), (big_b, input_dim), jnp.float32)
    out_b = mlp_forward(xb, w1, b1, w2, b2, block_batch=512)
    jax.block_until_ready(out_b)
    ref_b = jnp.maximum(jnp.maximum(xb @ w1 + b1, 0.0) @ w2 + b2, 0.0)
    assert out_b.shape == (big_b, size)
    assert jnp.allclose(out_b, ref_b, atol=1e-5, rtol=1e-5)

    # Non-multiple batch: padding is now bounded per-tile, result still exact.
    odd_b = 100
    xo = jax.random.normal(jax.random.PRNGKey(2), (odd_b, input_dim), jnp.float32)
    out_o = mlp_forward(xo, w1, b1, w2, b2)
    jax.block_until_ready(out_o)
    ref_o = jnp.maximum(jnp.maximum(xo @ w1 + b1, 0.0) @ w2 + b2, 0.0)
    assert out_o.shape == (odd_b, size)
    assert jnp.allclose(out_o, ref_o, atol=1e-5, rtol=1e-5)

    print("KERNEL_OK")
</pallas_src>

<mosaic_0001>
module attributes {stable_mosaic.version = 11 : i64} {
  func.func @mlp_kernel(%arg0: i32, %arg1: memref<8x3xf32, #tpu.memory_space<vmem>>, %arg2: memref<3x128xf32, #tpu.memory_space<vmem>>, %arg3: memref<1x128xf32, #tpu.memory_space<vmem>>, %arg4: memref<128x32xf32, #tpu.memory_space<vmem>>, %arg5: memref<1x32xf32, #tpu.memory_space<vmem>>, %arg6: memref<8x32xf32, #tpu.memory_space<vmem>>) attributes {dimension_semantics = [#tpu.dimension_semantics<parallel>], iteration_bounds = array<i64: 1>, scalar_prefetch = 0 : i64, scratch_operands = 0 : i64, tpu.core_type = #tpu.core_type<tc>, window_params = [{transform_indices = @transform_0, window_bounds = array<i64: 8, 3>}, {pipeline_mode = #tpu.pipeline_mode<synchronous>, transform_indices = @transform_1, window_bounds = array<i64: 3, 128>}, {pipeline_mode = #tpu.pipeline_mode<synchronous>, transform_indices = @transform_2, window_bounds = array<i64: 1, 128>}, {pipeline_mode = #tpu.pipeline_mode<synchronous>, transform_indices = @transform_3, window_bounds = array<i64: 128, 32>}, {pipeline_mode = #tpu.pipeline_mode<synchronous>, transform_indices = @transform_4, window_bounds = array<i64: 1, 32>}, {transform_indices = @transform_5, window_bounds = array<i64: 8, 32>}]} {
    %c0 = arith.constant 0 : index
    %c0_0 = arith.constant 0 : index
    %0 = vector.load %arg1[%c0, %c0_0] : memref<8x3xf32, #tpu.memory_space<vmem>>, vector<8x3xf32>
    %c0_1 = arith.constant 0 : index
    %c0_2 = arith.constant 0 : index
    %1 = vector.load %arg2[%c0_1, %c0_2] : memref<3x128xf32, #tpu.memory_space<vmem>>, vector<3x128xf32>
    %cst = arith.constant dense<0.000000e+00> : vector<8x128xf32>
    %2 = tpu.matmul %0, %1, %cst {dimension_numbers = #tpu.dot_dimension_numbers<[1], [0], [0], [1], [0, 0, 1, 1], [], []>} : vector<8x3xf32>, vector<3x128xf32>, vector<8x128xf32> -> vector<8x128xf32>
    %c0_3 = arith.constant 0 : index
    %c0_4 = arith.constant 0 : index
    %3 = vector.load %arg3[%c0_3, %c0_4] : memref<1x128xf32, #tpu.memory_space<vmem>>, vector<1x128xf32>
    %4 = vector.broadcast %3 : vector<1x128xf32> to vector<8x128xf32>
    %5 = arith.addf %2, %4 : vector<8x128xf32>
    %cst_5 = arith.constant 0.000000e+00 : f32
    %6 = vector.broadcast %cst_5 : f32 to vector<8x128xf32>
    %7 = arith.maximumf %5, %6 : vector<8x128xf32>
    %c0_6 = arith.constant 0 : index
    %c0_7 = arith.constant 0 : index
    %8 = vector.load %arg4[%c0_6, %c0_7] : memref<128x32xf32, #tpu.memory_space<vmem>>, vector<128x32xf32>
    %cst_8 = arith.constant dense<0.000000e+00> : vector<8x32xf32>
    %9 = tpu.matmul %7, %8, %cst_8 {dimension_numbers = #tpu.dot_dimension_numbers<[1], [0], [0], [1], [0, 0, 1, 1], [], []>} : vector<8x128xf32>, vector<128x32xf32>, vector<8x32xf32> -> vector<8x32xf32>
    %c0_9 = arith.constant 0 : index
    %c0_10 = arith.constant 0 : index
    %10 = vector.load %arg5[%c0_9, %c0_10] : memref<1x32xf32, #tpu.memory_space<vmem>>, vector<1x32xf32>
    %11 = vector.broadcast %10 : vector<1x32xf32> to vector<8x32xf32>
    %12 = arith.addf %9, %11 : vector<8x32xf32>
    %cst_11 = arith.constant 0.000000e+00 : f32
    %13 = vector.broadcast %cst_11 : f32 to vector<8x32xf32>
    %14 = arith.maximumf %12, %13 : vector<8x32xf32>
    %c0_12 = arith.constant 0 : index
    %c0_13 = arith.constant 0 : index
    %15 = vector.load %arg6[%c0_12, %c0_13] : memref<8x32xf32, #tpu.memory_space<vmem>>, vector<8x32xf32>
    tpu.vector_store %arg6[%c0_12, %c0_13], %14 {strides = array<i32>} : memref<8x32xf32, #tpu.memory_space<vmem>>, vector<8x32xf32>,
    return
  }
  func.func @transform_0(%arg0: i32) -> (i32, i32) {
    %c0_i32 = arith.constant 0 : i32
    %c0_i32_0 = arith.constant 0 : i32
    return %arg0, %c0_i32 : i32, i32
  }
  func.func @transform_1(%arg0: i32) -> (i32, i32) {
    %c0_i32 = arith.constant 0 : i32
    %c0_i32_0 = arith.constant 0 : i32
    %c0_i32_1 = arith.constant 0 : i32
    return %c0_i32, %c0_i32_0 : i32, i32
  }
  func.func @transform_2(%arg0: i32) -> (i32, i32) {
    %c0_i32 = arith.constant 0 : i32
    %c0_i32_0 = arith.constant 0 : i32
    %c0_i32_1 = arith.constant 0 : i32
    return %c0_i32, %c0_i32_0 : i32, i32
  }
  func.func @transform_3(%arg0: i32) -> (i32, i32) {
    %c0_i32 = arith.constant 0 : i32
    %c0_i32_0 = arith.constant 0 : i32
    %c0_i32_1 = arith.constant 0 : i32
    return %c0_i32, %c0_i32_0 : i32, i32
  }
  func.func @transform_4(%arg0: i32) -> (i32, i32) {
    %c0_i32 = arith.constant 0 : i32
    %c0_i32_0 = arith.constant 0 : i32
    %c0_i32_1 = arith.constant 0 : i32
    return %c0_i32, %c0_i32_0 : i32, i32
  }
  func.func @transform_5(%arg0: i32) -> (i32, i32) {
    %c0_i32 = arith.constant 0 : i32
    %c0_i32_0 = arith.constant 0 : i32
    return %arg0, %c0_i32 : i32, i32
  }
}

</mosaic_0001>

<llo_original>
// kernel: tpu_custom_call.1
$region0: #{tpu_custom_call.1}
  #allocation0 [shape = 'u32[]', space=smem, size = 0x4, offset = 0x4, fixed_abs, tag = 'smem constant byte address 0x4 - core index']
  #allocation1 [shape = 'u32[144,128]{1,0:T(1,128)}', space=vmem, size = 0x12000, scoped, tag = 'internal scratch']
  %s0 = inlined_call_operand.vmem [shape: f32[8,3], index: 0, kind: input, shape index: {}]
  %s1 = inlined_call_operand.vmem [shape: f32[3,128], index: 1, kind: input, shape index: {}]
  %s2 = inlined_call_operand.vmem [shape: f32[1,128], index: 2, kind: input, shape index: {}]
  %s3 = inlined_call_operand.vmem [shape: f32[128,32], index: 3, kind: input, shape index: {}]
  %s4 = inlined_call_operand.vmem [shape: f32[1,32], index: 4, kind: input, shape index: {}]
  %s5 = inlined_call_operand.hbm [shape: f32[8,32], index: 5, kind: output, shape index: {}]
  %s6 = sld [smem:[#allocation0]]
  $region30: #{tpu_custom_call.1} parent=0
    _
  %s8 = ssub.s32 1, %s6
  %s9 = scalar_select 0, %s8, %s6
  $region1: #{tpu_custom_call.1} parent=0
    #allocation2 [shape = 'u8[4096]{0}', space=vmem, size = 0x1000, scoped, tag = 'output window, operand 0, single buffered']
    #allocation3 [shape = 's32[1]{0}', space=sflag, size = 0x4, scoped, tag = 'scoped memory for tpu_custom_call.1']
    %10 = vsyncpa [#allocation3], 0
    // Predicated region
    $region2: #{tpu_custom_call.1} parent=1 // pred_check
      _
    $region3: #{tpu_custom_call.1} parent=1 // pred_check_branch
      %12 = sbr.rel (0) target = $region5
    $region4: #{tpu_custom_call.1} parent=1 // pred_region
      _
    $region5: #{tpu_custom_call.1} parent=1 // pred_fallthru
      _
    // Predicated region
    $region6: #{tpu_custom_call.1} parent=1 // pred_check
      _
    $region7: #{tpu_custom_call.1} parent=1 // pred_check_branch
      %14 = sbr.rel (0) target = $region9
    $region8: #{tpu_custom_call.1} parent=1 // pred_region
      _
    $region9: #{tpu_custom_call.1} parent=1 // pred_fallthru
      _
    // Predicated region
    $region10: #{tpu_custom_call.1} parent=1 // pred_check
      _
    $region11: #{tpu_custom_call.1} parent=1 // pred_check_branch
      %16 = sbr.rel (0) target = $region13
    $region12: #{tpu_custom_call.1} parent=1 // pred_region
      _
    $region13: #{tpu_custom_call.1} parent=1 // pred_fallthru
      _
    // Predicated region
    $region14: #{tpu_custom_call.1} parent=1 // pred_check
      _
    $region15: #{tpu_custom_call.1} parent=1 // pred_check_branch
      %18 = sbr.rel (0) target = $region17
    $region16: #{tpu_custom_call.1} parent=1 // pred_region
      _
    $region17: #{tpu_custom_call.1} parent=1 // pred_fallthru
      _
    // Predicated region
    $region18: #{tpu_custom_call.1} parent=1 // pred_check
      _
    $region19: #{tpu_custom_call.1} parent=1 // pred_check_branch
      %20 = sbr.rel (0) target = $region21
    $region20: #{tpu_custom_call.1} parent=1 // pred_region
      _
    $region21: #{tpu_custom_call.1} parent=1 // pred_fallthru
      _
    %v21 = vld [vmem:[%s0] sm:$0xff]
    %v22 = vld [vmem:[%s1] sm:$0x7]
    %v23 = vld [vmem:[%s2] sm:$0x1]
    %v25 = vlaneseq
    %v26 = vshrl.u32 %v25, 7
    %v27 = vsub.s32 0, %v26
    %v28 = vrot.slane %v23, %v27
    %vm30 = vcmask 23552
    %v32 = vsel %vm30, %v21, 0
    %vm34 = vcmask 1042432
    %v36 = vsel %vm34, %v22, 0
    %38 = vmatprep.subr.mxu0 0.0
    %39 = vmatpush1.msra.mxu0 %v36
    %40 = vmatprep.subr.mxu0 0.0
    %41 = vmatpush1.msra.mxu0 0.0
    %42 = vmatprep.subr.mxu0 0.0
    %43 = vmatpush1.msra.mxu0 0.0
    %44 = vmatprep.subr.mxu0 0.0
    %45 = vmatpush1.msra.mxu0 0.0
    %46 = vmatprep.subr.mxu0 0.0
    %47 = vmatpush1.msra.mxu0 0.0
    %48 = vmatprep.subr.mxu0 0.0
    %49 = vmatpush1.msra.mxu0 0.0
    %50 = vmatprep.subr.mxu0 0.0
    %51 = vmatpush1.msra.mxu0 0.0
    %52 = vmatprep.subr.mxu0 0.0
    %53 = vmatpush1.msra.mxu0 0.0
    %54 = vmatprep.subr.mxu0 0.0
    %55 = vmatpush1.msra.mxu0 0.0
    %56 = vmatprep.subr.mxu0 0.0
    %57 = vmatpush1.msra.mxu0 0.0
    %58 = vmatprep.subr.mxu0 0.0
    %59 = vmatpush1.msra.mxu0 0.0
    %60 = vmatprep.subr.mxu0 0.0
    %61 = vmatpush1.msra.mxu0 0.0
    %62 = vmatprep.subr.mxu0 0.0
    %63 = vmatpush1.msra.mxu0 0.0
    %64 = vmatprep.subr.mxu0 0.0
    %65 = vmatpush1.msra.mxu0 0.0
    %66 = vmatprep.subr.mxu0 0.0
    %67 = vmatpush1.msra.mxu0 0.0
    %68 = vmatprep.subr.mxu0 0.0
    %69 = vmatpush1.msra.mxu0 0.0
    %70 = vmatprep.subr.mxu0 0.0
    %71 = vmatpush1.msra.mxu0 0.0
    %72 = vmatprep.subr.mxu0 0.0
    %73 = vmatpush1.msra.mxu0 0.0
    %74 = vmatprep.subr.mxu0 0.0
    %75 = vmatpush1.msra.mxu0 0.0
    %76 = vmatprep.subr.mxu0 0.0
    %77 = vmatpush1.msra.mxu0 0.0
    %78 = vmatprep.subr.mxu0 0.0
    %79 = vmatpush1.msra.mxu0 0.0
    %80 = vmatprep.subr.mxu0 0.0
    %81 = vmatpush1.msra.mxu0 0.0
    %82 = vmatprep.subr.mxu0 0.0
    %83 = vmatpush1.msra.mxu0 0.0
    %84 = vmatprep.subr.mxu0 0.0
    %85 = vmatpush1.msra.mxu0 0.0
    %86 = vmatprep.subr.mxu0 0.0
    %87 = vmatpush1.msra.mxu0 0.0
    %88 = vmatprep.subr.mxu0 0.0
    %89 = vmatpush1.msra.mxu0 0.0
    %90 = vmatprep.subr.mxu0 0.0
    %91 = vmatpush1.msra.mxu0 0.0
    %92 = vmatprep.subr.mxu0 0.0
    %93 = vmatpush1.msra.mxu0 0.0
    %94 = vmatprep.subr.mxu0 0.0
    %95 = vmatpush1.msra.mxu0 0.0
    %96 = vmatprep.subr.mxu0 0.0
    %97 = vmatpush1.msra.mxu0 0.0
    %98 = vmatprep.subr.mxu0 0.0
    %99 = vmatpush1.msra.mxu0 0.0
    %100 = vmatprep.subr.mxu0 0.0
    %101 = vmatpush1.msra.mxu0 0.0
    %102 = vmatprep.mubr.f32.mxu0 0.0
    %103 = vmatmul.mubr.f32.gmra.mrb[0].mxu0 %v32
    %v104 = vpop.f32.mrb[0].mxu0
    %v105 = vadd.f32 %v28, %v104
    %v106 = vpop.f32.mrb[0].mxu0
    %107 = vdwg.mxu0
    %v108 = vmax.f32 %v105, 0.0
    %v109 = vld [vmem:[%s3] sm:$0xff]
    %v110 = vld [vmem:[%s3 + $0x8] sm:$0xff]
    %v111 = vld [vmem:[%s3 + $0x10] sm:$0xff]
    %v112 = vld [vmem:[%s3 + $0x18] sm:$0xff]
    %v113 = vld [vmem:[%s3 + $0x20] sm:$0xff]
    %v114 = vld [vmem:[%s3 + $0x28] sm:$0xff]
    %v115 = vld [vmem:[%s3 + $0x30] sm:$0xff]
    %v116 = vld [vmem:[%s3 + $0x38] sm:$0xff]
    %v117 = vld [vmem:[%s3 + $0x40] sm:$0xff]
    %v118 = vld [vmem:[%s3 + $0x48] sm:$0xff]
    %v119 = vld [vmem:[%s3 + $0x50] sm:$0xff]
    %v120 = vld [vmem:[%s3 + $0x58] sm:$0xff]
    %v121 = vld [vmem:[%s3 + $0x60] sm:$0xff]
    %v122 = vld [vmem:[%s3 + $0x68] sm:$0xff]
    %v123 = vld [vmem:[%s3 + $0x70] sm:$0xff]
    %v124 = vld [vmem:[%s3 + $0x78] sm:$0xff]
    %v125 = vld [vmem:[%s4] sm:$0x1]
    %v127 = vlaneseq
    %v128 = vshrl.u32 %v127, 7
    %v129 = vsub.s32 0, %v128
    %v130 = vrot.slane %v125, %v129
    %132 = vmatprep.subr.mxu0 0.0
    %133 = vmatpush1.msra.mxu0 %v109
    %134 = vmatprep.subr.mxu0 0.0
    %135 = vmatpush1.msra.mxu0 %v110
    %136 = vmatprep.subr.mxu0 0.0
    %137 = vmatpush1.msra.mxu0 %v111
    %138 = vmatprep.subr.mxu0 0.0
    %139 = vmatpush1.msra.mxu0 %v112
    %140 = vmatprep.subr.mxu0 0.0
    %141 = vmatpush1.msra.mxu0 %v113
    %142 = vmatprep.subr.mxu0 0.0
    %143 = vmatpush1.msra.mxu0 %v114
    %144 = vmatprep.subr.mxu0 0.0
    %145 = vmatpush1.msra.mxu0 %v115
    %146 = vmatprep.subr.mxu0 0.0
    %147 = vmatpush1.msra.mxu0 %v116
    %148 = vmatprep.subr.mxu0 0.0
    %149 = vmatpush1.msra.mxu0 %v117
    %150 = vmatprep.subr.mxu0 0.0
    %151 = vmatpush1.msra.mxu0 %v118
    %152 = vmatprep.subr.mxu0 0.0
    %153 = vmatpush1.msra.mxu0 %v119
    %154 = vmatprep.subr.mxu0 0.0
    %155 = vmatpush1.msra.mxu0 %v120
    %156 = vmatprep.subr.mxu0 0.0
    %157 = vmatpush1.msra.mxu0 %v121
    %158 = vmatprep.subr.mxu0 0.0
    %159 = vmatpush1.msra.mxu0 %v122
    %160 = vmatprep.subr.mxu0 0.0
    %161 = vmatpush1.msra.mxu0 %v123
    %162 = vmatprep.subr.mxu0 0.0
    %163 = vmatpush1.msra.mxu0 %v124
    %164 = vmatprep.subr.mxu0 0.0
    %165 = vmatpush1.msra.mxu0 0.0
    %166 = vmatprep.subr.mxu0 0.0
    %167 = vmatpush1.msra.mxu0 0.0
    %168 = vmatprep.subr.mxu0 0.0
    %169 = vmatpush1.msra.mxu0 0.0
    %170 = vmatprep.subr.mxu0 0.0
    %171 = vmatpush1.msra.mxu0 0.0
    %172 = vmatprep.subr.mxu0 0.0
    %173 = vmatpush1.msra.mxu0 0.0
    %174 = vmatprep.subr.mxu0 0.0
    %175 = vmatpush1.msra.mxu0 0.0
    %176 = vmatprep.subr.mxu0 0.0
    %177 = vmatpush1.msra.mxu0 0.0
    %178 = vmatprep.subr.mxu0 0.0
    %179 = vmatpush1.msra.mxu0 0.0
    %180 = vmatprep.subr.mxu0 0.0
    %181 = vmatpush1.msra.mxu0 0.0
    %182 = vmatprep.subr.mxu0 0.0
    %183 = vmatpush1.msra.mxu0 0.0
    %184 = vmatprep.subr.mxu0 0.0
    %185 = vmatpush1.msra.mxu0 0.0
    %186 = vmatprep.subr.mxu0 0.0
    %187 = vmatpush1.msra.mxu0 0.0
    %188 = vmatprep.subr.mxu0 0.0
    %189 = vmatpush1.msra.mxu0 0.0
    %190 = vmatprep.subr.mxu0 0.0
    %191 = vmatpush1.msra.mxu0 0.0
    %192 = vmatprep.subr.mxu0 0.0
    %193 = vmatpush1.msra.mxu0 0.0
    %194 = vmatprep.subr.mxu0 0.0
    %195 = vmatpush1.msra.mxu0 0.0
    %196 = vmatprep.mubr.f32.mxu0 0.0
    %197 = vmatmul.mubr.f32.gmra.mrb[0].mxu0 %v108
    %v198 = vpop.f32.mrb[0].mxu0
    %v199 = vadd.f32 %v130, %v198
    %v200 = vpop.f32.mrb[0].mxu0
    %201 = vdwg.mxu0
    %v202 = vmax.f32 %v199, 0.0
    %vm203 = vcmask 261120
    %204 = vst.msk [vmem:[#allocation2] sm:$0xff] %vm203, %v202
    // Predicated region
    $region22: #{tpu_custom_call.1} parent=1 // pred_check
      _
    $region23: #{tpu_custom_call.1} parent=1 // pred_check_branch
      %206 = sbr.rel (0) target = $region25
    $region24: #{tpu_custom_call.1} parent=1 // pred_region
      %s208 = ssub.s32 128, 128
      %209 = vsyncadd [#allocation3], %s208
      %s211 = sshll.u32 [#allocation2], 4
      %s212 = int_to_ptr.vmem [resolvable:$true] %s211
      %214 = dma.vmem_to_hbm [thread:$0]  %s212, 128, %s5, [#allocation3]
    $region25: #{tpu_custom_call.1} parent=1 // pred_fallthru
      _
    // Predicated region
    $region26: #{tpu_custom_call.1} parent=1 // pred_check
      _
    $region27: #{tpu_custom_call.1} parent=1 // pred_check_branch
      %216 = sbr.rel (0) target = $region29
    $region28: #{tpu_custom_call.1} parent=1 // pred_region
      %217 = dma.done [#allocation3], 128
    $region29: #{tpu_custom_call.1} parent=1 // pred_fallthru
      _
    %218 = vsyncpa [#allocation3], 1

</llo_original>
